<compile_context>
chip_gen: v7x
topology: tpu7x:2x2x1
jax: 0.10.0
libtpu: 0.0.40
codegen_flags: <defaults>
</compile_context>

<pallas_src>
import functools

import jax
import jax.numpy as jnp
from jax.experimental import pallas as pl
from jax.experimental.pallas import tpu as pltpu


def _leaky_relu_kernel(x_ref, y_ref, mask_ref, *, alpha):
    x = x_ref[...]
    one = jnp.ones((), dtype=x.dtype)
    a = jnp.asarray(alpha, dtype=x.dtype)
    # mask = (x > 0) ? 1 : alpha
    # (matches PyTorch: mask = (x > 0).type(dtype); mask += (1 - mask) * alpha)
    mask = jnp.where(x > 0, one, a)
    mask_ref[...] = mask.astype(mask_ref.dtype)
    y_ref[...] = x * mask


def _tpu_budget():
    """(target_block_bytes, vmem_limit_bytes, min_grid) tuned per TPU generation."""
    vmem_cap = None
    try:
        vmem_cap = int(pltpu.get_tpu_info().vmem_capacity_bytes)
    except Exception:
        vmem_cap = None  # unknown backend / older jax -> conservative defaults
    if vmem_cap is not None and vmem_cap > 96 * 1024 * 1024:
        # v5e / v6e class: 128 MiB VMEM, single TensorCore.
        return 8 * 1024 * 1024, 64 * 1024 * 1024, 1
    # v7x class (or unknown): 64 MiB VMEM, 2 TensorCores. Keep the footprint
    # (3 streams x 2 buffers x block) well under the limit and ensure several
    # grid steps so the "parallel" axis can use both cores.
    return 4 * 1024 * 1024, 40 * 1024 * 1024, 4


def _call_2d(x2d, alpha, *, sublane, itemsize):
    rows, width = x2d.shape
    dtype = x2d.dtype
    n = rows * width
    target_block_bytes, vmem_limit, min_grid = _tpu_budget()

    block_rows = (target_block_bytes // max(1, width * itemsize)) // sublane * sublane
    block_rows = max(sublane, block_rows)
    # On multi-TensorCore chips, never collapse non-tiny tensors to a single grid
    # step: cap block_rows so grid >= min_grid (sublane-aligned blocks).
    if min_grid > 1 and rows >= min_grid * sublane and n * itemsize >= (1 << 20):
        block_rows = min(block_rows, pl.cdiv(rows, min_grid * sublane) * sublane)
    if rows <= block_rows:
        # Single full-extent block: exempt from the (8,128) divisibility rule.
        block_rows = rows
    grid = (pl.cdiv(rows, block_rows),)
    blk = (block_rows, width)

    kernel = functools.partial(_leaky_relu_kernel, alpha=float(alpha))
    return pl.pallas_call(
        kernel,
        out_shape=(
            jax.ShapeDtypeStruct((rows, width), dtype),
            # TODO(synk): mask could be emitted as int8 (or reconstructed downstream
            # from sign(y), or fused into a log-det reduction) to cut ~1/3 of HBM
            # traffic, but that changes the returned dtype vs the PyTorch module.
            jax.ShapeDtypeStruct((rows, width), dtype),
        ),
        grid_spec=pltpu.PrefetchScalarGridSpec(
            num_scalar_prefetch=0,
            grid=grid,
            in_specs=[pl.BlockSpec(blk, lambda i: (i, 0))],
            out_specs=[
                pl.BlockSpec(blk, lambda i: (i, 0)),
                pl.BlockSpec(blk, lambda i: (i, 0)),
            ],
        ),
        compiler_params=pltpu.CompilerParams(
            dimension_semantics=("parallel",),
            vmem_limit_bytes=vmem_limit,
        ),
        cost_estimate=pl.CostEstimate(
            flops=2 * n, transcendentals=0, bytes_accessed=3 * n * itemsize
        ),
    )(x2d)


def leaky_relu_flow(x, alpha=0.1):
    """Pallas implementation of the invertible LeakyReLU forward.

    Returns (y, mask) with y = x * mask and mask = 1 where x > 0 else alpha,
    both in x.dtype (matching the PyTorch module).
    """
    assert alpha >= 0.01, "Alpha should be positive"
    orig_shape = x.shape
    dtype = x.dtype
    itemsize = jnp.dtype(dtype).itemsize
    # Sublane packing granularity: 8 (f32) / 16 (bf16) / 32 (int8).
    sublane = max(8, 32 // itemsize)
    n = x.size

    if n == 0:
        mask = jnp.full(orig_shape, 1, dtype=dtype)
        return x, mask

    # ---- Fast path: lane-dense slab (widest width in {1024..128} dividing n). ----
    width = None
    for w in (1024, 512, 256, 128):
        if n % w == 0:
            width = w
            break

    if width is not None:
        x2d = jnp.reshape(x, (n // width, width))
    elif x.ndim >= 2:
        # Fallback (n not a multiple of 128): keep the native trailing dim as the
        # full-extent lane dim. Stores may be lane-masked, but there is no
        # wrapper-side pad/slice, so HBM traffic stays at 1 read + 2 writes.
        width = orig_shape[-1]
        x2d = jnp.reshape(x, (n // width, width))
    else:
        # 1-D / scalar with n not a multiple of 128: single full-extent block.
        # TODO(synk): a huge 1-D tensor with n % 128 != 0 would need a
        # bulk + remainder split to respect the VMEM budget; not needed here.
        x2d = jnp.reshape(x, (1, n))

    y2d, mask2d = _call_2d(x2d, alpha, sublane=sublane, itemsize=itemsize)
    return jnp.reshape(y2d, orig_shape), jnp.reshape(mask2d, orig_shape)


if __name__ == "__main__":
    key = jax.random.PRNGKey(0)
    alpha = 0.1

    def ref_fn(x):
        m = (x > 0).astype(x.dtype)
        m = m + (1 - m) * alpha
        return x * m, m

    # Small NCHW input consistent with a flow over images (fast lane-dense path).
    x = jax.random.normal(key, (2, 4, 16, 16), dtype=jnp.float32)
    y, mask = leaky_relu_flow(x, alpha=alpha)
    jax.block_until_ready((y, mask))
    y_ref, mask_ref = ref_fn(x)
    assert jnp.allclose(y, y_ref, atol=1e-6, rtol=1e-6)
    assert jnp.allclose(mask, mask_ref, atol=1e-6, rtol=1e-6)

    # Larger case: exercises multi-step grid (and megacore split on v7x).
    x_big = jax.random.normal(jax.random.PRNGKey(1), (8, 16, 64, 64), dtype=jnp.float32)
    y_big, mask_big = leaky_relu_flow(x_big, alpha=alpha)
    jax.block_until_ready((y_big, mask_big))
    y_big_ref, mask_big_ref = ref_fn(x_big)
    assert jnp.allclose(y_big, y_big_ref, atol=1e-6, rtol=1e-6)
    assert jnp.allclose(mask_big, mask_big_ref, atol=1e-6, rtol=1e-6)

    # Fallback path: n not a multiple of 128 (no pad / slice, masked lane stores).
    x_odd = jax.random.normal(jax.random.PRNGKey(2), (2, 3, 5, 16), dtype=jnp.float32)
    y_odd, mask_odd = leaky_relu_flow(x_odd, alpha=alpha)
    jax.block_until_ready((y_odd, mask_odd))
    y_odd_ref, mask_odd_ref = ref_fn(x_odd)
    assert jnp.allclose(y_odd, y_odd_ref, atol=1e-6, rtol=1e-6)
    assert jnp.allclose(mask_odd, mask_odd_ref, atol=1e-6, rtol=1e-6)

    print("KERNEL_OK")
</pallas_src>

<mosaic_0001>
module attributes {stable_mosaic.version = 11 : i64} {
  func.func @_leaky_relu_kernel(%arg0: i32, %arg1: memref<2x1024xf32, #tpu.memory_space<vmem>>, %arg2: memref<2x1024xf32, #tpu.memory_space<vmem>>, %arg3: memref<2x1024xf32, #tpu.memory_space<vmem>>) attributes {dimension_semantics = [#tpu.dimension_semantics<parallel>], iteration_bounds = array<i64: 1>, scalar_prefetch = 0 : i64, scratch_operands = 0 : i64, tpu.core_type = #tpu.core_type<tc>, window_params = [{transform_indices = @transform_0, window_bounds = array<i64: 2, 1024>}, {transform_indices = @transform_1, window_bounds = array<i64: 2, 1024>}, {transform_indices = @transform_2, window_bounds = array<i64: 2, 1024>}]} {
    %c0 = arith.constant 0 : index
    %c0_0 = arith.constant 0 : index
    %0 = vector.load %arg1[%c0, %c0_0] : memref<2x1024xf32, #tpu.memory_space<vmem>>, vector<2x1024xf32>
    %cst = arith.constant 0.000000e+00 : f32
    %1 = vector.broadcast %cst : f32 to vector<2x1024xf32>
    %2 = arith.cmpf ogt, %0, %1 : vector<2x1024xf32>
    %cst_1 = arith.constant 1.000000e+00 : f32
    %cst_2 = arith.constant 1.000000e-01 : f32
    %3 = vector.broadcast %cst_1 : f32 to vector<2x1024xf32>
    %4 = vector.broadcast %cst_2 : f32 to vector<2x1024xf32>
    %5 = arith.select %2, %3, %4 : vector<2x1024xi1>, vector<2x1024xf32>
    %c0_3 = arith.constant 0 : index
    %c0_4 = arith.constant 0 : index
    %6 = vector.load %arg3[%c0_3, %c0_4] : memref<2x1024xf32, #tpu.memory_space<vmem>>, vector<2x1024xf32>
    tpu.vector_store %arg3[%c0_3, %c0_4], %5 {strides = array<i32>} : memref<2x1024xf32, #tpu.memory_space<vmem>>, vector<2x1024xf32>,
    %7 = arith.mulf %0, %5 : vector<2x1024xf32>
    %c0_5 = arith.constant 0 : index
    %c0_6 = arith.constant 0 : index
    %8 = vector.load %arg2[%c0_5, %c0_6] : memref<2x1024xf32, #tpu.memory_space<vmem>>, vector<2x1024xf32>
    tpu.vector_store %arg2[%c0_5, %c0_6], %7 {strides = array<i32>} : memref<2x1024xf32, #tpu.memory_space<vmem>>, vector<2x1024xf32>,
    return
  }
  func.func @transform_0(%arg0: i32) -> (i32, i32) {
    %c0_i32 = arith.constant 0 : i32
    %c0_i32_0 = arith.constant 0 : i32
    return %arg0, %c0_i32 : i32, i32
  }
  func.func @transform_1(%arg0: i32) -> (i32, i32) {
    %c0_i32 = arith.constant 0 : i32
    %c0_i32_0 = arith.constant 0 : i32
    return %arg0, %c0_i32 : i32, i32
  }
  func.func @transform_2(%arg0: i32) -> (i32, i32) {
    %c0_i32 = arith.constant 0 : i32
    %c0_i32_0 = arith.constant 0 : i32
    return %arg0, %c0_i32 : i32, i32
  }
}

</mosaic_0001>

<llo_original>
// kernel: tpu_custom_call.1
$region0: #{tpu_custom_call.1}
  #allocation0 [shape = 'u32[]', space=smem, size = 0x4, offset = 0x4, fixed_abs, tag = 'smem constant byte address 0x4 - core index']
  #allocation1 [shape = 'u32[144,128]{1,0:T(1,128)}', space=vmem, size = 0x12000, scoped, tag = 'internal scratch']
  %s0 = inlined_call_operand.hbm [shape: f32[2,1024], index: 0, kind: input, shape index: {}]
  %s1 = inlined_call_operand.hbm [shape: f32[2,1024], index: 1, kind: output, shape index: {0}]
  %s2 = inlined_call_operand.hbm [shape: f32[2,1024], index: 2, kind: output, shape index: {1}]
  %3 = xla_tuple %s1, %s2
  %s4 = sld [smem:[#allocation0]]
  $region26: #{tpu_custom_call.1} parent=0
    _
  %s6 = ssub.s32 1, %s4
  %s7 = scalar_select 0, %s6, %s4
  $region1: #{tpu_custom_call.1} parent=0
    #allocation2 [shape = 'u8[8192]{0}', space=vmem, size = 0x2000, scoped, tag = 'input window, operand 0, single buffered']
    #allocation3 [shape = 's32[1]{0}', space=sflag, size = 0x4, scoped, tag = 'scoped memory for tpu_custom_call.1']
    #allocation4 [shape = 's32[1]{0}', space=sflag, size = 0x4, scoped, tag = 'scoped memory for tpu_custom_call.1']
    #allocation5 [shape = 'u8[8192]{0}', space=vmem, size = 0x2000, scoped, tag = 'output window, operand 0, single buffered']
    #allocation6 [shape = 'u8[8192]{0}', space=vmem, size = 0x2000, scoped, tag = 'output window, operand 1, single buffered']
    #allocation7 [shape = 's32[1]{0}', space=sflag, size = 0x4, scoped, tag = 'scoped memory for tpu_custom_call.1']
    %8 = vsyncpa [#allocation3], 0
    %9 = vsyncpa [#allocation4], 0
    %10 = vsyncpa [#allocation7], 0
    // Predicated region
    $region2: #{tpu_custom_call.1} parent=1 // pred_check
      _
    $region3: #{tpu_custom_call.1} parent=1 // pred_check_branch
      %12 = sbr.rel (0) target = $region5
    $region4: #{tpu_custom_call.1} parent=1 // pred_region
      %s14 = ssub.s32 256, 256
      %15 = vsyncadd [#allocation3], %s14
      %s17 = sshll.u32 [#allocation2], 4
      %s18 = int_to_ptr.vmem [resolvable:$true] %s17
      %20 = dma.hbm_to_vmem [thread:$0]  %s0, 256, %s18, [#allocation3]
    $region5: #{tpu_custom_call.1} parent=1 // pred_fallthru
      _
    // Predicated region
    $region6: #{tpu_custom_call.1} parent=1 // pred_check
      _
    $region7: #{tpu_custom_call.1} parent=1 // pred_check_branch
      %22 = sbr.rel (0) target = $region9
    $region8: #{tpu_custom_call.1} parent=1 // pred_region
      %23 = dma.done [#allocation3], 256
    $region9: #{tpu_custom_call.1} parent=1 // pred_fallthru
      _
    %v24 = vld [vmem:[#allocation2] sm:$0xff]
    %v25 = vld [vmem:[#allocation2 + $0x8] sm:$0xff]
    %vm26 = vcmp.gt.f32.partialorder %v24, 0.0
    %vm27 = vcmp.gt.f32.partialorder %v25, 0.0
    %v28 = vsel %vm26, 1.0, 0.1
    %v29 = vsel %vm27, 1.0, 0.1
    %30 = vst [vmem:[#allocation6] sm:$0xff] %v28
    %31 = vst [vmem:[#allocation6 + $0x8] sm:$0xff] %v29
    %v32 = vmul.f32 %v24, %v28
    %v33 = vmul.f32 %v25, %v29
    %34 = vst [vmem:[#allocation5] sm:$0xff] %v32
    %35 = vst [vmem:[#allocation5 + $0x8] sm:$0xff] %v33
    // Predicated region
    $region10: #{tpu_custom_call.1} parent=1 // pred_check
      _
    $region11: #{tpu_custom_call.1} parent=1 // pred_check_branch
      %37 = sbr.rel (0) target = $region13
    $region12: #{tpu_custom_call.1} parent=1 // pred_region
      %s39 = ssub.s32 256, 256
      %40 = vsyncadd [#allocation4], %s39
      %s42 = sshll.u32 [#allocation5], 4
      %s43 = int_to_ptr.vmem [resolvable:$true] %s42
      %45 = dma.vmem_to_hbm [thread:$0]  %s43, 256, %s1, [#allocation4]
    $region13: #{tpu_custom_call.1} parent=1 // pred_fallthru
      _
    // Predicated region
    $region14: #{tpu_custom_call.1} parent=1 // pred_check
      _
    $region15: #{tpu_custom_call.1} parent=1 // pred_check_branch
      %47 = sbr.rel (0) target = $region17
    $region16: #{tpu_custom_call.1} parent=1 // pred_region
      %s49 = ssub.s32 256, 256
      %50 = vsyncadd [#allocation7], %s49
      %s52 = sshll.u32 [#allocation6], 4
      %s53 = int_to_ptr.vmem [resolvable:$true] %s52
      %55 = dma.vmem_to_hbm [thread:$0]  %s53, 256, %s2, [#allocation7]
    $region17: #{tpu_custom_call.1} parent=1 // pred_fallthru
      _
    // Predicated region
    $region18: #{tpu_custom_call.1} parent=1 // pred_check
      _
    $region19: #{tpu_custom_call.1} parent=1 // pred_check_branch
      %57 = sbr.rel (0) target = $region21
    $region20: #{tpu_custom_call.1} parent=1 // pred_region
      %58 = dma.done [#allocation4], 256
    $region21: #{tpu_custom_call.1} parent=1 // pred_fallthru
      _
    // Predicated region
    $region22: #{tpu_custom_call.1} parent=1 // pred_check
      _
    $region23: #{tpu_custom_call.1} parent=1 // pred_check_branch
      %60 = sbr.rel (0) target = $region25
    $region24: #{tpu_custom_call.1} parent=1 // pred_region
      %61 = dma.done [#allocation7], 256
    $region25: #{tpu_custom_call.1} parent=1 // pred_fallthru
      _
    %62 = vsyncpa [#allocation3], 1
    %63 = vsyncpa [#allocation4], 1
    %64 = vsyncpa [#allocation7], 1

</llo_original>
